<compile_context>
chip_gen: v5e
topology: v5e:2x2
jax: 0.10.0
libtpu: 0.0.40
codegen_flags: <defaults>
</compile_context>

<pallas_src>
import jax
import jax.numpy as jnp
from jax.experimental import pallas as pl
from jax.experimental.pallas import tpu as pltpu


_VMEM_LIMIT = 32 * 1024 * 1024  # scoped VMEM we explicitly request


# ---------------------------------------------------------------------------
# Kernels (element-wise streaming; VPU only, HBM-bound)
# ---------------------------------------------------------------------------

def _train_sum_kernel(x_ref, his_ref, beta_ref, his_out_ref):
    # his' = his * beta + x ; out == his', so it is written exactly once.
    his_out_ref[...] = his_ref[...] * beta_ref[...] + x_ref[...]


def _train_mean_kernel(x_ref, his_ref, beta_ref, invw_ref, his_out_ref, out_ref):
    new_his = his_ref[...] * beta_ref[...] + x_ref[...]
    his_out_ref[...] = new_his
    out_ref[...] = new_his * invw_ref[...]


def _eval_mean_kernel(x_ref, invw_ref, out_ref):
    # eval: his' = x (returned directly from the wrapper), out = x * inv_w
    out_ref[...] = x_ref[...] * invw_ref[...]


# ---------------------------------------------------------------------------
# Wrapper
# ---------------------------------------------------------------------------

def _pick_row_tile(N, D, itemsize, n_row_streams):
    """Largest multiple-of-8 row tile whose double-buffered (tm, D) blocks
    (one per row-shaped stream) fit in ~half of the scoped-VMEM budget."""
    budget = _VMEM_LIMIT // 2                      # leave headroom for columns
    per_block = budget // max(1, 2 * n_row_streams)  # double-buffered streams
    tm = per_block // max(1, D * itemsize)
    tm = max(8, min(4096, tm))
    tm -= tm % 8
    tm = max(8, tm)
    # If the whole array fits in one tile, take the full extent (always legal).
    return N if N <= tm else tm


def emma_sum(x, his_x, agg_n, inv_w, *, training=True, aggr="sum"):
    """Functional EmmaSum forward.

    Returns (out, his_x_new). his_x is aliased into his_x_new in training mode
    (treat the input buffer as donated / invalidated after the call).
    """
    assert aggr in {"sum", "mean"}
    assert x.ndim == 2 and his_x.shape == x.shape
    N, D = x.shape
    dtype = x.dtype

    # eval + sum: his_x <- x and out == his_x'. Pure identity; no kernel.
    if (not training) and aggr == "sum":
        return x, x

    itemsize = jnp.dtype(dtype).itemsize
    n_row_streams = 4 if (training and aggr == "mean") else (3 if training else 2)
    tm = _pick_row_tile(N, D, itemsize, n_row_streams)
    grid = (pl.cdiv(N, tm),)

    row_spec = pl.BlockSpec((tm, D), lambda i: (i, 0))
    col_spec = pl.BlockSpec((tm, 1), lambda i: (i, 0))
    cparams = pltpu.CompilerParams(
        dimension_semantics=("parallel",),
        vmem_limit_bytes=_VMEM_LIMIT,  # raise v5e's 16 MiB scoped default
    )

    inv_w_col = inv_w.reshape(N, 1).astype(dtype)

    if training:
        # beta computed once, in f32, in the wrapper (one narrow column DMA
        # per grid step instead of two, full precision for bf16 activations).
        beta = jnp.clip(
            1.0 - inv_w.astype(jnp.float32) * agg_n.astype(jnp.float32),
            0.0, 1.0,
        ).astype(dtype).reshape(N, 1)

        if aggr == "sum":
            his_new = pl.pallas_call(
                _train_sum_kernel,
                out_shape=jax.ShapeDtypeStruct((N, D), dtype),
                grid_spec=pltpu.PrefetchScalarGridSpec(
                    num_scalar_prefetch=0,
                    grid=grid,
                    in_specs=[row_spec, row_spec, col_spec],
                    out_specs=row_spec,
                ),
                input_output_aliases={1: 0},  # in-place his_x update
                compiler_params=cparams,
            )(x, his_x, beta)
            return his_new, his_new  # out is bit-identical to his_new

        his_new, out = pl.pallas_call(
            _train_mean_kernel,
            out_shape=(jax.ShapeDtypeStruct((N, D), dtype),
                       jax.ShapeDtypeStruct((N, D), dtype)),
            grid_spec=pltpu.PrefetchScalarGridSpec(
                num_scalar_prefetch=0,
                grid=grid,
                in_specs=[row_spec, row_spec, col_spec, col_spec],
                out_specs=[row_spec, row_spec],
            ),
            input_output_aliases={1: 0},
            compiler_params=cparams,
        )(x, his_x, beta, inv_w_col)
        return out, his_new

    # eval + mean: his_x' = x (returned directly), out = x * inv_w
    out = pl.pallas_call(
        _eval_mean_kernel,
        out_shape=jax.ShapeDtypeStruct((N, D), dtype),
        grid_spec=pltpu.PrefetchScalarGridSpec(
            num_scalar_prefetch=0,
            grid=grid,
            in_specs=[row_spec, col_spec],
            out_specs=row_spec,
        ),
        compiler_params=cparams,
    )(x, inv_w_col)
    return out, x


# ---------------------------------------------------------------------------
# Reference + self-test
# ---------------------------------------------------------------------------

def _reference(x, his_x, agg_n, inv_w, training, aggr):
    if training:
        beta = jnp.clip(1.0 - inv_w * agg_n, 0.0, 1.0)[:, None]
        his = his_x * beta + x
    else:
        his = x
    out = his * inv_w[:, None] if aggr == "mean" else his
    return out, his


if __name__ == "__main__":
    key = jax.random.PRNGKey(0)
    k1, k2, k3, k4 = jax.random.split(key, 4)

    N, D = 16, 128  # small 2-D node-feature matrix
    x = jax.random.normal(k1, (N, D), dtype=jnp.float32)
    his_x = jax.random.normal(k2, (N, D), dtype=jnp.float32)
    agg_n = jax.random.randint(k3, (N,), 0, 5).astype(jnp.float32)
    inv_w = jax.random.uniform(k4, (N,), minval=0.1, maxval=1.0,
                               dtype=jnp.float32)

    ok = True
    for training in (True, False):
        for aggr in ("sum", "mean"):
            out, his_new = emma_sum(x, his_x, agg_n, inv_w,
                                    training=training, aggr=aggr)
            out = jax.block_until_ready(out)
            his_new = jax.block_until_ready(his_new)
            ref_out, ref_his = _reference(x, his_x, agg_n, inv_w,
                                          training, aggr)
            ok &= bool(jnp.allclose(out, ref_out, atol=1e-5, rtol=1e-5))
            ok &= bool(jnp.allclose(his_new, ref_his, atol=1e-5, rtol=1e-5))

    if ok:
        print("KERNEL_OK")
    else:
        print("KERNEL_MISMATCH")
</pallas_src>

<mosaic_0001>
module attributes {stable_mosaic.version = 11 : i64} {
  func.func @_train_sum_kernel(%arg0: i32, %arg1: memref<16x128xf32, #tpu.memory_space<vmem>>, %arg2: memref<16x128xf32, #tpu.memory_space<vmem>>, %arg3: memref<16x1xf32, #tpu.memory_space<vmem>>, %arg4: memref<16x128xf32, #tpu.memory_space<vmem>>) attributes {dimension_semantics = [#tpu.dimension_semantics<parallel>], iteration_bounds = array<i64: 1>, scalar_prefetch = 0 : i64, scratch_operands = 0 : i64, tpu.core_type = #tpu.core_type<tc>, window_params = [{transform_indices = @transform_0, window_bounds = array<i64: 16, 128>}, {transform_indices = @transform_1, window_bounds = array<i64: 16, 128>}, {transform_indices = @transform_2, window_bounds = array<i64: 16, 1>}, {transform_indices = @transform_3, window_bounds = array<i64: 16, 128>}]} {
    %c0 = arith.constant 0 : index
    %c0_0 = arith.constant 0 : index
    %0 = vector.load %arg2[%c0, %c0_0] : memref<16x128xf32, #tpu.memory_space<vmem>>, vector<16x128xf32>
    %c0_1 = arith.constant 0 : index
    %c0_2 = arith.constant 0 : index
    %1 = vector.load %arg3[%c0_1, %c0_2] : memref<16x1xf32, #tpu.memory_space<vmem>>, vector<16x1xf32>
    %2 = vector.broadcast %1 : vector<16x1xf32> to vector<16x128xf32>
    %3 = arith.mulf %0, %2 : vector<16x128xf32>
    %c0_3 = arith.constant 0 : index
    %c0_4 = arith.constant 0 : index
    %4 = vector.load %arg1[%c0_3, %c0_4] : memref<16x128xf32, #tpu.memory_space<vmem>>, vector<16x128xf32>
    %5 = arith.addf %3, %4 : vector<16x128xf32>
    %c0_5 = arith.constant 0 : index
    %c0_6 = arith.constant 0 : index
    %6 = vector.load %arg4[%c0_5, %c0_6] : memref<16x128xf32, #tpu.memory_space<vmem>>, vector<16x128xf32>
    tpu.vector_store %arg4[%c0_5, %c0_6], %5 {strides = array<i32>} : memref<16x128xf32, #tpu.memory_space<vmem>>, vector<16x128xf32>,
    return
  }
  func.func @transform_0(%arg0: i32) -> (i32, i32) {
    %c0_i32 = arith.constant 0 : i32
    %c0_i32_0 = arith.constant 0 : i32
    return %arg0, %c0_i32 : i32, i32
  }
  func.func @transform_1(%arg0: i32) -> (i32, i32) {
    %c0_i32 = arith.constant 0 : i32
    %c0_i32_0 = arith.constant 0 : i32
    return %arg0, %c0_i32 : i32, i32
  }
  func.func @transform_2(%arg0: i32) -> (i32, i32) {
    %c0_i32 = arith.constant 0 : i32
    %c0_i32_0 = arith.constant 0 : i32
    return %arg0, %c0_i32 : i32, i32
  }
  func.func @transform_3(%arg0: i32) -> (i32, i32) {
    %c0_i32 = arith.constant 0 : i32
    %c0_i32_0 = arith.constant 0 : i32
    return %arg0, %c0_i32 : i32, i32
  }
}

</mosaic_0001>

<llo_original>
// kernel: tpu_custom_call.1
$region0: #{tpu_custom_call.1}
  #allocation0 [shape = 'u32[]', space=smem, size = 0x4, offset = 0x4, fixed_abs, tag = 'smem constant byte address 0x4 - core index']
  #allocation1 [shape = 'u32[72,128]{1,0:T(1,128)}', space=vmem, size = 0x9000, scoped, tag = 'internal scratch']
  %s0 = inlined_call_operand.vmem [shape: f32[16,128], index: 0, kind: input, shape index: {}]
  %s1 = inlined_call_operand.hbm [shape: f32[16,128], index: 1, kind: input, shape index: {}, may-alias: {1,3}]
  %s2 = inlined_call_operand.vmem [shape: f32[16,1], index: 2, kind: input, shape index: {}]
  %s3 = inlined_call_operand.hbm [shape: f32[16,128], index: 3, kind: output, shape index: {}, may-alias: {1,3}]
  %s4 = sld [smem:[#allocation0]]
  $region26: #{tpu_custom_call.1} parent=0
    _
  %s6 = ssub.s32 1, %s4
  %s7 = scalar_select 0, %s6, %s4
  $region1: #{tpu_custom_call.1} parent=0
    #allocation2 [shape = 'u8[8192]{0}', space=vmem, size = 0x2000, scoped, tag = 'input window, operand 1, single buffered']
    #allocation3 [shape = 's32[1]{0}', space=sflag, size = 0x4, scoped, tag = 'scoped memory for tpu_custom_call.1']
    #allocation4 [shape = 's32[1]{0}', space=sflag, size = 0x4, scoped, tag = 'scoped memory for tpu_custom_call.1']
    #allocation5 [shape = 'u8[8192]{0}', space=vmem, size = 0x2000, scoped, tag = 'output window, operand 0, single buffered']
    %8 = vsyncpa [#allocation3], 0
    %9 = vsyncpa [#allocation4], 0
    // Predicated region
    $region2: #{tpu_custom_call.1} parent=1 // pred_check
      _
    $region3: #{tpu_custom_call.1} parent=1 // pred_check_branch
      %11 = sbr.rel (0) target = $region5
    $region4: #{tpu_custom_call.1} parent=1 // pred_region
      _
    $region5: #{tpu_custom_call.1} parent=1 // pred_fallthru
      _
    // Predicated region
    $region6: #{tpu_custom_call.1} parent=1 // pred_check
      _
    $region7: #{tpu_custom_call.1} parent=1 // pred_check_branch
      %13 = sbr.rel (0) target = $region9
    $region8: #{tpu_custom_call.1} parent=1 // pred_region
      %15 = vsyncadd [#allocation3], 0
      %s16 = sshll.u32 %s1, 4
      %s17 = int_to_ptr.hbm [resolvable:$true] %s16
      %s18 = sshll.u32 [#allocation2], 4
      %s19 = int_to_ptr.vmem [resolvable:$true] %s18
      %24 = dma.hbm_to_vmem [thread:$0]  %s17, 256, %s19, [#allocation3], 128, 128, 8
    $region9: #{tpu_custom_call.1} parent=1 // pred_fallthru
      _
    // Predicated region
    $region10: #{tpu_custom_call.1} parent=1 // pred_check
      _
    $region11: #{tpu_custom_call.1} parent=1 // pred_check_branch
      %26 = sbr.rel (0) target = $region13
    $region12: #{tpu_custom_call.1} parent=1 // pred_region
      _
    $region13: #{tpu_custom_call.1} parent=1 // pred_fallthru
      _
    // Predicated region
    $region14: #{tpu_custom_call.1} parent=1 // pred_check
      _
    $region15: #{tpu_custom_call.1} parent=1 // pred_check_branch
      %28 = sbr.rel (0) target = $region17
    $region16: #{tpu_custom_call.1} parent=1 // pred_region
      %30 = dma.done [#allocation3], 256
    $region17: #{tpu_custom_call.1} parent=1 // pred_fallthru
      _
    %v31 = vld [vmem:[#allocation2] sm:$0xff]
    %v32 = vld [vmem:[#allocation2 + $0x8] sm:$0xff]
    %v33 = vld [vmem:[%s2] sm:$0xff]
    %v34 = vld [vmem:[%s2 + $0x8] sm:$0xff]
    %36 = vset.pattern.permute.xlu0 0
    %37 = vperm.xlu0 %36, %v33
    %v38 = vpop.permute.xlu0 %37
    %41 = vset.pattern.permute.xlu0 0
    %42 = vperm.xlu0 %41, %v34
    %v43 = vpop.permute.xlu0 %42
    %v45 = vmul.f32 %v31, %v38
    %v46 = vmul.f32 %v32, %v43
    %v47 = vld [vmem:[%s0] sm:$0xff]
    %v48 = vld [vmem:[%s0 + $0x8] sm:$0xff]
    %v49 = vadd.f32 %v45, %v47
    %v50 = vadd.f32 %v46, %v48
    %51 = vst [vmem:[#allocation5] sm:$0xff] %v49
    %52 = vst [vmem:[#allocation5 + $0x8] sm:$0xff] %v50
    // Predicated region
    $region18: #{tpu_custom_call.1} parent=1 // pred_check
      _
    $region19: #{tpu_custom_call.1} parent=1 // pred_check_branch
      %54 = sbr.rel (0) target = $region21
    $region20: #{tpu_custom_call.1} parent=1 // pred_region
      %56 = vsyncadd [#allocation4], 0
      %s57 = sshll.u32 [#allocation5], 4
      %s58 = int_to_ptr.vmem [resolvable:$true] %s57
      %s59 = sshll.u32 %s3, 4
      %s60 = int_to_ptr.hbm [resolvable:$true] %s59
      %65 = dma.vmem_to_hbm [thread:$0]  %s58, 256, %s60, [#allocation4], 128, 128, 8
    $region21: #{tpu_custom_call.1} parent=1 // pred_fallthru
      _
    // Predicated region
    $region22: #{tpu_custom_call.1} parent=1 // pred_check
      _
    $region23: #{tpu_custom_call.1} parent=1 // pred_check_branch
      %67 = sbr.rel (0) target = $region25
    $region24: #{tpu_custom_call.1} parent=1 // pred_region
      %69 = dma.done [#allocation4], 256
    $region25: #{tpu_custom_call.1} parent=1 // pred_fallthru
      _
    %70 = vsyncpa [#allocation3], 1
    %71 = vsyncpa [#allocation4], 1

</llo_original>
